<compile_context>
chip_gen: v5e
topology: v5e:2x2
jax: 0.10.0
libtpu: 0.0.40
codegen_flags: <defaults>
</compile_context>

<pallas_src>
import functools

import jax
import jax.numpy as jnp
from jax.experimental import pallas as pl
from jax.experimental.pallas import tpu as pltpu

# Module hyperparameters (d_model / d_ff of the PyTorch module).
D_MODEL = 128
D_FF = 256
LN_EPS = 1e-5


def _ffn_kernel(x_ref, w1_ref, b1_ref, w2_ref, p_ref, o_ref):
    """One token tile: conv1(k=1) -> ReLU -> conv2(k=1) -> +residual -> LayerNorm."""
    x = x_ref[...]                                   # (tm, d_model), f32 or bf16
    x_f32 = x.astype(jnp.float32)                    # residual / LN path in f32

    # MXU matmuls with bf16 operands, f32 accumulation.
    h = jnp.dot(x.astype(jnp.bfloat16), w1_ref[...],
                preferred_element_type=jnp.float32)  # (tm, d_ff)
    h = jnp.maximum(h + b1_ref[...], 0.0)            # bias + ReLU in f32

    y = jnp.dot(h.astype(jnp.bfloat16), w2_ref[...],
                preferred_element_type=jnp.float32)  # (tm, d_model)

    p = p_ref[...]                                   # (3, d_model): b2, gamma, beta
    y = y + p[0:1, :] + x_f32                        # bias + residual add, f32

    # Single-pass LayerNorm statistics: two independent lane reductions.
    mean = jnp.mean(y, axis=-1, keepdims=True)
    msq = jnp.mean(y * y, axis=-1, keepdims=True)
    var = jnp.maximum(msq - mean * mean, 0.0)        # guard fp cancellation
    yn = (y - mean) * jax.lax.rsqrt(var + LN_EPS)
    o_ref[...] = (yn * p[1:2, :] + p[2:3, :]).astype(o_ref.dtype)


def _round_up(n, m):
    return ((n + m - 1) // m) * m


@functools.partial(jax.jit, static_argnames=("tm",))
def poswise_ffn(x, w1, b1, w2, b2, gamma, beta, *, tm=4096):
    """x: (B, S, d_model), f32 or bf16 (bf16 = activation-I/O mode).

    Returns (B, S, d_model) in x.dtype.
    """
    B, S, D = x.shape
    assert D == D_MODEL
    n_tok = B * S

    # Effective token tile: large to amortize the ~0.35us/step overhead, but
    # capped at ~n_tok/2 so the grid has >=2 steps (feeds both v7x TCs);
    # always a multiple of 8 so the (tm, 128) BlockSpec is legal.
    half = _round_up(max(1, (n_tok + 1) // 2), 8)
    tm_eff = max(8, min(_round_up(tm, 8), half))
    grid = (pl.cdiv(n_tok, tm_eff),)   # ragged last block handled by Pallas masking

    x2d = x.reshape(n_tok, D)          # free reshape, no HBM copy

    # Weights resident in bf16 (MXU operands, half the weight bytes);
    # b1 and the packed (b2, gamma, beta) stay f32.
    w1b = w1.astype(jnp.bfloat16)
    w2b = w2.astype(jnp.bfloat16)
    b1r = b1.reshape(1, D_FF).astype(jnp.float32)
    params = jnp.stack([b2.astype(jnp.float32),
                        gamma.astype(jnp.float32),
                        beta.astype(jnp.float32)], axis=0)   # (3, d_model)

    full = lambda i: (0, 0)  # parameters: same whole block for every grid step

    out = pl.pallas_call(
        _ffn_kernel,
        out_shape=jax.ShapeDtypeStruct((n_tok, D), x.dtype),
        grid_spec=pltpu.PrefetchScalarGridSpec(
            num_scalar_prefetch=0,
            grid=grid,
            in_specs=[
                pl.BlockSpec((tm_eff, D_MODEL), lambda i: (i, 0)),  # x tile
                pl.BlockSpec((D_MODEL, D_FF), full),                # W1^T (bf16)
                pl.BlockSpec((1, D_FF), full),                      # b1
                pl.BlockSpec((D_FF, D_MODEL), full),                # W2^T (bf16)
                pl.BlockSpec((3, D_MODEL), full),                   # b2 / gamma / beta
            ],
            out_specs=pl.BlockSpec((tm_eff, D_MODEL), lambda i: (i, 0)),
        ),
        compiler_params=pltpu.CompilerParams(
            dimension_semantics=("parallel",),
            # <= ~48 MiB keeps 2-deep buffering within v7x's 64 MiB VMEM while
            # leaving plenty of headroom on v5e/v6e (128 MiB) at tm=4096.
            vmem_limit_bytes=48 * 1024 * 1024,
        ),
    )(x2d, w1b, b1r, w2b, params)

    return out.reshape(B, S, D)


def _reference(x, w1, b1, w2, b2, gamma, beta):
    """Pure-JAX f32 reference mirroring the PyTorch forward exactly."""
    x = x.astype(jnp.float32)
    h = jnp.maximum(jnp.einsum("bsd,df->bsf", x, w1) + b1, 0.0)
    y = jnp.einsum("bsf,fd->bsd", h, w2) + b2 + x
    mean = jnp.mean(y, axis=-1, keepdims=True)
    var = jnp.mean((y - mean) ** 2, axis=-1, keepdims=True)
    return (y - mean) * jax.lax.rsqrt(var + LN_EPS) * gamma + beta


if __name__ == "__main__":
    key = jax.random.PRNGKey(0)
    kx, k1, k2, k3, k4, kx2 = jax.random.split(key, 6)

    # Deterministic synthetic parameters.
    # PyTorch conv1 weight is (d_ff, d_model, 1); we store its transpose (d_model, d_ff).
    w1 = jax.random.normal(k1, (D_MODEL, D_FF), dtype=jnp.float32) * 0.05
    b1 = jax.random.normal(k2, (D_FF,), dtype=jnp.float32) * 0.05
    # PyTorch conv2 weight is (d_model, d_ff, 1); we store its transpose (d_ff, d_model).
    w2 = jax.random.normal(k3, (D_FF, D_MODEL), dtype=jnp.float32) * 0.05
    b2 = jax.random.normal(k4, (D_MODEL,), dtype=jnp.float32) * 0.05
    gamma = jnp.ones((D_MODEL,), dtype=jnp.float32)
    beta = jnp.zeros((D_MODEL,), dtype=jnp.float32)

    # Case 1: small canonical shape, f32 activations.
    B, S = 2, 8
    x = jax.random.normal(kx, (B, S, D_MODEL), dtype=jnp.float32)
    out = jax.block_until_ready(poswise_ffn(x, w1, b1, w2, b2, gamma, beta))
    ref = _reference(x, w1, b1, w2, b2, gamma, beta)
    assert out.shape == (B, S, D_MODEL)
    # bf16 MXU operands (f32 accumulation / LN) => ~1e-3 abs error vs f32 reference.
    assert jnp.allclose(out, ref, atol=2e-2, rtol=2e-2), "mismatch vs reference (case 1)"

    # Case 2: non-divisible token count to exercise the ragged (masked) last tile.
    B2, S2 = 2, 13
    x2 = jax.random.normal(kx2, (B2, S2, D_MODEL), dtype=jnp.float32)
    out2 = jax.block_until_ready(poswise_ffn(x2, w1, b1, w2, b2, gamma, beta))
    ref2 = _reference(x2, w1, b1, w2, b2, gamma, beta)
    assert out2.shape == (B2, S2, D_MODEL)
    assert jnp.allclose(out2, ref2, atol=2e-2, rtol=2e-2), "mismatch vs reference (case 2)"

    # Case 3: bf16 activation-I/O mode (half the activation HBM traffic).
    x3 = x.astype(jnp.bfloat16)
    out3 = jax.block_until_ready(poswise_ffn(x3, w1, b1, w2, b2, gamma, beta))
    assert out3.dtype == jnp.bfloat16 and out3.shape == (B, S, D_MODEL)
    assert jnp.allclose(out3.astype(jnp.float32), ref, atol=6e-2, rtol=6e-2), \
        "mismatch vs reference (case 3, bf16 I/O)"

    print("KERNEL_OK")
</pallas_src>

<mosaic_0001>
module attributes {stable_mosaic.version = 11 : i64} {
  func.func @_ffn_kernel(%arg0: i32, %arg1: memref<8x128xf32, #tpu.memory_space<vmem>>, %arg2: memref<128x256xbf16, #tpu.memory_space<vmem>>, %arg3: memref<1x256xf32, #tpu.memory_space<vmem>>, %arg4: memref<256x128xbf16, #tpu.memory_space<vmem>>, %arg5: memref<3x128xf32, #tpu.memory_space<vmem>>, %arg6: memref<8x128xf32, #tpu.memory_space<vmem>>) attributes {dimension_semantics = [#tpu.dimension_semantics<parallel>], iteration_bounds = array<i64: 2>, scalar_prefetch = 0 : i64, scratch_operands = 0 : i64, tpu.core_type = #tpu.core_type<tc>, window_params = [{transform_indices = @transform_0, window_bounds = array<i64: 8, 128>}, {pipeline_mode = #tpu.pipeline_mode<synchronous>, transform_indices = @transform_1, window_bounds = array<i64: 128, 256>}, {pipeline_mode = #tpu.pipeline_mode<synchronous>, transform_indices = @transform_2, window_bounds = array<i64: 1, 256>}, {pipeline_mode = #tpu.pipeline_mode<synchronous>, transform_indices = @transform_3, window_bounds = array<i64: 256, 128>}, {pipeline_mode = #tpu.pipeline_mode<synchronous>, transform_indices = @transform_4, window_bounds = array<i64: 3, 128>}, {transform_indices = @transform_5, window_bounds = array<i64: 8, 128>}]} {
    %c0 = arith.constant 0 : index
    %c0_0 = arith.constant 0 : index
    %0 = vector.load %arg1[%c0, %c0_0] : memref<8x128xf32, #tpu.memory_space<vmem>>, vector<8x128xf32>
    %1 = arith.truncf %0 : vector<8x128xf32> to vector<8x128xbf16>
    %c0_1 = arith.constant 0 : index
    %c0_2 = arith.constant 0 : index
    %2 = vector.load %arg2[%c0_1, %c0_2] : memref<128x256xbf16, #tpu.memory_space<vmem>>, vector<128x256xbf16>
    %cst = arith.constant dense<0.000000e+00> : vector<8x256xf32>
    %3 = tpu.matmul %1, %2, %cst {dimension_numbers = #tpu.dot_dimension_numbers<[1], [0], [0], [1], [0, 0, 1, 1], [], []>} : vector<8x128xbf16>, vector<128x256xbf16>, vector<8x256xf32> -> vector<8x256xf32>
    %c0_3 = arith.constant 0 : index
    %c0_4 = arith.constant 0 : index
    %4 = vector.load %arg3[%c0_3, %c0_4] : memref<1x256xf32, #tpu.memory_space<vmem>>, vector<1x256xf32>
    %5 = vector.broadcast %4 : vector<1x256xf32> to vector<8x256xf32>
    %6 = arith.addf %3, %5 : vector<8x256xf32>
    %cst_5 = arith.constant 0.000000e+00 : f32
    %7 = vector.broadcast %cst_5 : f32 to vector<8x256xf32>
    %8 = arith.maximumf %6, %7 : vector<8x256xf32>
    %9 = arith.truncf %8 : vector<8x256xf32> to vector<8x256xbf16>
    %c0_6 = arith.constant 0 : index
    %c0_7 = arith.constant 0 : index
    %10 = vector.load %arg4[%c0_6, %c0_7] : memref<256x128xbf16, #tpu.memory_space<vmem>>, vector<256x128xbf16>
    %cst_8 = arith.constant dense<0.000000e+00> : vector<8x128xf32>
    %11 = tpu.matmul %9, %10, %cst_8 {dimension_numbers = #tpu.dot_dimension_numbers<[1], [0], [0], [1], [0, 0, 1, 1], [], []>} : vector<8x256xbf16>, vector<256x128xbf16>, vector<8x128xf32> -> vector<8x128xf32>
    %c0_9 = arith.constant 0 : index
    %c0_10 = arith.constant 0 : index
    %12 = vector.load %arg5[%c0_9, %c0_10] : memref<3x128xf32, #tpu.memory_space<vmem>>, vector<3x128xf32>
    %13 = vector.extract_strided_slice %12 {offsets = [0, 0], sizes = [1, 128], strides = [1, 1]} : vector<3x128xf32> to vector<1x128xf32>
    %14 = vector.broadcast %13 : vector<1x128xf32> to vector<8x128xf32>
    %15 = arith.addf %11, %14 : vector<8x128xf32>
    %16 = arith.addf %15, %0 : vector<8x128xf32>
    %cst_11 = arith.constant dense<0.000000e+00> : vector<8xf32>
    %17 = vector.multi_reduction <add>, %16, %cst_11 [1] : vector<8x128xf32> to vector<8xf32>
    %18 = vector.shape_cast %17 : vector<8xf32> to vector<8x1xf32>
    %cst_12 = arith.constant 1.280000e+02 : f32
    %19 = vector.broadcast %cst_12 : f32 to vector<8x1xf32>
    %20 = arith.divf %18, %19 : vector<8x1xf32>
    %21 = arith.mulf %16, %16 : vector<8x128xf32>
    %cst_13 = arith.constant dense<0.000000e+00> : vector<8xf32>
    %22 = vector.multi_reduction <add>, %21, %cst_13 [1] : vector<8x128xf32> to vector<8xf32>
    %23 = vector.shape_cast %22 : vector<8xf32> to vector<8x1xf32>
    %cst_14 = arith.constant 1.280000e+02 : f32
    %24 = vector.broadcast %cst_14 : f32 to vector<8x1xf32>
    %25 = arith.divf %23, %24 : vector<8x1xf32>
    %26 = arith.mulf %20, %20 : vector<8x1xf32>
    %27 = arith.subf %25, %26 : vector<8x1xf32>
    %cst_15 = arith.constant 0.000000e+00 : f32
    %28 = vector.broadcast %cst_15 : f32 to vector<8x1xf32>
    %29 = arith.maximumf %27, %28 : vector<8x1xf32>
    %30 = vector.broadcast %20 : vector<8x1xf32> to vector<8x128xf32>
    %31 = arith.subf %16, %30 : vector<8x128xf32>
    %cst_16 = arith.constant 9.99999974E-6 : f32
    %32 = vector.broadcast %cst_16 : f32 to vector<8x1xf32>
    %33 = arith.addf %29, %32 : vector<8x1xf32>
    %34 = math.rsqrt %33 : vector<8x1xf32>
    %35 = vector.broadcast %34 : vector<8x1xf32> to vector<8x128xf32>
    %36 = arith.mulf %31, %35 : vector<8x128xf32>
    %37 = vector.extract_strided_slice %12 {offsets = [1, 0], sizes = [1, 128], strides = [1, 1]} : vector<3x128xf32> to vector<1x128xf32>
    %38 = vector.broadcast %37 : vector<1x128xf32> to vector<8x128xf32>
    %39 = arith.mulf %36, %38 : vector<8x128xf32>
    %40 = vector.extract_strided_slice %12 {offsets = [2, 0], sizes = [1, 128], strides = [1, 1]} : vector<3x128xf32> to vector<1x128xf32>
    %41 = vector.broadcast %40 : vector<1x128xf32> to vector<8x128xf32>
    %42 = arith.addf %39, %41 : vector<8x128xf32>
    %c0_17 = arith.constant 0 : index
    %c0_18 = arith.constant 0 : index
    %43 = vector.load %arg6[%c0_17, %c0_18] : memref<8x128xf32, #tpu.memory_space<vmem>>, vector<8x128xf32>
    tpu.vector_store %arg6[%c0_17, %c0_18], %42 {strides = array<i32>} : memref<8x128xf32, #tpu.memory_space<vmem>>, vector<8x128xf32>,
    return
  }
  func.func @transform_0(%arg0: i32) -> (i32, i32) {
    %c0_i32 = arith.constant 0 : i32
    %c0_i32_0 = arith.constant 0 : i32
    return %arg0, %c0_i32 : i32, i32
  }
  func.func @transform_1(%arg0: i32) -> (i32, i32) {
    %c0_i32 = arith.constant 0 : i32
    %c0_i32_0 = arith.constant 0 : i32
    %c0_i32_1 = arith.constant 0 : i32
    return %c0_i32, %c0_i32_0 : i32, i32
  }
  func.func @transform_2(%arg0: i32) -> (i32, i32) {
    %c0_i32 = arith.constant 0 : i32
    %c0_i32_0 = arith.constant 0 : i32
    %c0_i32_1 = arith.constant 0 : i32
    return %c0_i32, %c0_i32_0 : i32, i32
  }
  func.func @transform_3(%arg0: i32) -> (i32, i32) {
    %c0_i32 = arith.constant 0 : i32
    %c0_i32_0 = arith.constant 0 : i32
    %c0_i32_1 = arith.constant 0 : i32
    return %c0_i32, %c0_i32_0 : i32, i32
  }
  func.func @transform_4(%arg0: i32) -> (i32, i32) {
    %c0_i32 = arith.constant 0 : i32
    %c0_i32_0 = arith.constant 0 : i32
    %c0_i32_1 = arith.constant 0 : i32
    return %c0_i32, %c0_i32_0 : i32, i32
  }
  func.func @transform_5(%arg0: i32) -> (i32, i32) {
    %c0_i32 = arith.constant 0 : i32
    %c0_i32_0 = arith.constant 0 : i32
    return %arg0, %c0_i32 : i32, i32
  }
}

</mosaic_0001>

<llo_original>
// kernel: poswise_ffn.1
$region0: #{poswise_ffn.1}
  #allocation0 [shape = 'u32[]', space=smem, size = 0x4, offset = 0x4, fixed_abs, tag = 'smem constant byte address 0x4 - core index']
  #allocation1 [shape = 'u32[72,128]{1,0:T(1,128)}', space=vmem, size = 0x9000, scoped, tag = 'internal scratch']
  %s0 = inlined_call_operand.vmem [shape: f32[16,128], index: 0, kind: input, shape index: {}]
  %s1 = inlined_call_operand.vmem [shape: bf16[128,256], index: 1, kind: input, shape index: {}]
  %s2 = inlined_call_operand.vmem [shape: f32[1,256], index: 2, kind: input, shape index: {}]
  %s3 = inlined_call_operand.vmem [shape: bf16[256,128], index: 3, kind: input, shape index: {}]
  %s4 = inlined_call_operand.vmem [shape: f32[3,128], index: 4, kind: input, shape index: {}]
  %s5 = inlined_call_operand.hbm [shape: f32[16,128], index: 5, kind: output, shape index: {}]
  %s6 = sld [smem:[#allocation0]]
  $region53: #{poswise_ffn.1} parent=0
    _
  %s8 = ssub.s32 1, %s6
  %s9 = scalar_select 0, %s8, %s6
  $region1: #{poswise_ffn.1} parent=0
    #allocation2 [shape = 'u8[8192]{0}', space=vmem, size = 0x2000, scoped, tag = 'output window, operand 0']
    #allocation3 [shape = 's32[2]{0}', space=sflag, size = 0x8, scoped, tag = 'scoped memory for poswise_ffn.1']
    %10 = vsyncpa [#allocation3], 0
    %s11 = scalar_lea.sflag [#allocation3], 1
    %12 = vsyncpa %s11, 0
    loop: start=0, step=1, limit=4
    $region2: #{poswise_ffn.1} parent=1 // loop_pre_header
      _
    $region3: #{poswise_ffn.1} parent=1 // loop_header
      %s14 = sphi 0, %s18
      %p15 = scmp.ge.s32.totalorder %s14, 4
      %s24 = sphi 0, %s26
      %s27 = sphi 0, %s24
      %s28 = sphi 0, %s27
      %s44 = sphi 0, %s28
      %s48 = sphi 0, %s48
      %s50 = sphi 0, %s48
      %s51 = sphi 0, %s50
      %s65 = sphi 0, %s51
      %s69 = sphi 0, %s69
      %s71 = sphi 0, %s69
      %s72 = sphi 0, %s71
      %s86 = sphi 0, %s72
      %s90 = sphi 0, %s90
      %s92 = sphi 0, %s90
      %s93 = sphi 0, %s92
      %s107 = sphi 0, %s93
      %s111 = sphi 0, %s111
      %s113 = sphi 0, %s111
      %s114 = sphi 0, %s113
      %s128 = sphi 0, %s114
      %s134 = sphi 0, %s136
      %s137 = sphi 0, %s134
      %s138 = sphi 0, %s137
      %s154 = sphi 0, %s138
    $region4: #{poswise_ffn.1} parent=1 // loop_header_branch
      %17 = sbr.rel (%p15) target = $region8
    $region5: #{poswise_ffn.1} parent=1 // loop_body
      %s19 = ssub.s32 %s14, 1
      %s20 = ssub.s32 %s14, 2
      %s21 = sadd.s32 %s14, 1
      %s22 = ssub.s32 %s14, %s21
      %p23 = scmp.eq.s32.totalorder %s22, 0
      %s25 = sadd.s32 %s24, 1
      %s26 = scalar_select %p23, %s24, %s25
      %p29 = pneg %p23
      %p30 = scmp.eq.s32.totalorder %s14, 1
      %p31 = por %p29, %p30
      %p32 = scmp.ne.s32.totalorder %s24, %s27
      %p33 = scmp.eq.s32.totalorder %s14, 0
      %p34 = por %p32, %p33
      %p35 = scmp.ne.s32.totalorder %s24, %s27
      %p36 = scmp.eq.s32.totalorder %s19, 1
      %p37 = por %p35, %p36
      %p38 = scmp.ne.s32.totalorder %s27, %s28
      %p39 = scmp.eq.s32.totalorder %s19, 0
      %p40 = por %p38, %p39
      %p41 = scmp.ne.s32.totalorder %s27, %s28
      %p42 = scmp.eq.s32.totalorder %s20, 1
      %p43 = por %p41, %p42
      %p45 = scmp.ne.s32.totalorder %s28, %s44
      %p46 = scmp.eq.s32.totalorder %s20, 0
      %p47 = por %p45, %p46
      %s49 = sadd.s32 %s48, 1
      %p52 = scmp.eq.s32.totalorder %s14, 1
      %p53 = scmp.ne.s32.totalorder %s48, %s50
      %p54 = scmp.eq.s32.totalorder %s14, 0
      %p55 = por %p53, %p54
      %p56 = scmp.ne.s32.totalorder %s48, %s50
      %p57 = scmp.eq.s32.totalorder %s19, 1
      %p58 = por %p56, %p57
      %p59 = scmp.ne.s32.totalorder %s50, %s51
      %p60 = scmp.eq.s32.totalorder %s19, 0
      %p61 = por %p59, %p60
      %p62 = scmp.ne.s32.totalorder %s50, %s51
      %p63 = scmp.eq.s32.totalorder %s20, 1
      %p64 = por %p62, %p63
      %p66 = scmp.ne.s32.totalorder %s51, %s65
      %p67 = scmp.eq.s32.totalorder %s20, 0
      %p68 = por %p66, %p67
      %s70 = sadd.s32 %s69, 1
      %p73 = scmp.eq.s32.totalorder %s14, 1
      %p74 = scmp.ne.s32.totalorder %s69, %s71
      %p75 = scmp.eq.s32.totalorder %s14, 0
      %p76 = por %p74, %p75
      %p77 = scmp.ne.s32.totalorder %s69, %s71
      %p78 = scmp.eq.s32.totalorder %s19, 1
      %p79 = por %p77, %p78
      %p80 = scmp.ne.s32.totalorder %s71, %s72
      %p81 = scmp.eq.s32.totalorder %s19, 0
      %p82 = por %p80, %p81
      %p83 = scmp.ne.s32.totalorder %s71, %s72
      %p84 = scmp.eq.s32.totalorder %s20, 1
      %p85 = por %p83, %p84
      %p87 = scmp.ne.s32.totalorder %s72, %s86
      %p88 = scmp.eq.s32.totalorder %s20, 0
      %p89 = por %p87, %p88
      %s91 = sadd.s32 %s90, 1
      %p94 = scmp.eq.s32.totalorder %s14, 1
      %p95 = scmp.ne.s32.totalorder %s90, %s92
      %p96 = scmp.eq.s32.totalorder %s14, 0
      %p97 = por %p95, %p96
      %p98 = scmp.ne.s32.totalorder %s90, %s92
      %p99 = scmp.eq.s32.totalorder %s19, 1
      %p100 = por %p98, %p99
      %p101 = scmp.ne.s32.totalorder %s92, %s93
      %p102 = scmp.eq.s32.totalorder %s19, 0
      %p103 = por %p101, %p102
      %p104 = scmp.ne.s32.totalorder %s92, %s93
      %p105 = scmp.eq.s32.totalorder %s20, 1
      %p106 = por %p104, %p105
      %p108 = scmp.ne.s32.totalorder %s93, %s107
      %p109 = scmp.eq.s32.totalorder %s20, 0
      %p110 = por %p108, %p109
      %s112 = sadd.s32 %s111, 1
      %p115 = scmp.eq.s32.totalorder %s14, 1
      %p116 = scmp.ne.s32.totalorder %s111, %s113
      %p117 = scmp.eq.s32.totalorder %s14, 0
      %p118 = por %p116, %p117
      %p119 = scmp.ne.s32.totalorder %s111, %s113
      %p120 = scmp.eq.s32.totalorder %s19, 1
      %p121 = por %p119, %p120
      %p122 = scmp.ne.s32.totalorder %s113, %s114
      %p123 = scmp.eq.s32.totalorder %s19, 0
      %p124 = por %p122, %p123
      %p125 = scmp.ne.s32.totalorder %s113, %s114
      %p126 = scmp.eq.s32.totalorder %s20, 1
      %p127 = por %p125, %p126
      %p129 = scmp.ne.s32.totalorder %s114, %s128
      %p130 = scmp.eq.s32.totalorder %s20, 0
      %p131 = por %p129, %p130
      %s132 = ssub.s32 %s14, %s21
      %p133 = scmp.eq.s32.totalorder %s132, 0
      %s135 = sadd.s32 %s134, 1
      %s136 = scalar_select %p133, %s134, %s135
      %p139 = pneg %p133
      %p140 = scmp.eq.s32.totalorder %s14, 1
      %p141 = por %p139, %p140
      %p142 = scmp.ne.s32.totalorder %s134, %s137
      %p143 = scmp.eq.s32.totalorder %s14, 0
      %p144 = por %p142, %p143
      %p145 = scmp.ne.s32.totalorder %s134, %s137
      %p146 = scmp.eq.s32.totalorder %s19, 1
      %p147 = por %p145, %p146
      %p148 = scmp.ne.s32.totalorder %s137, %s138
      %p149 = scmp.eq.s32.totalorder %s19, 0
      %p150 = por %p148, %p149
      %p151 = scmp.ne.s32.totalorder %s137, %s138
      %p152 = scmp.eq.s32.totalorder %s20, 1
      %p153 = por %p151, %p152
      %p155 = scmp.ne.s32.totalorder %s138, %s154
      %p156 = scmp.eq.s32.totalorder %s20, 0
      %p157 = por %p155, %p156
      %p158 = scmp.le.s32.totalorder 1, %s14
      %p159 = scmp.lt.s32.totalorder %s14, 3
      %p160 = pnand %p158, %p159
      %p161 = pneg %p160
      // Predicated region
      $region9: #{poswise_ffn.1} parent=5 // pred_check
        _
      $region10: #{poswise_ffn.1} parent=5 // pred_check_branch
        %163 = sbr.rel (%p160) target = $region12
      $region11: #{poswise_ffn.1} parent=5 // pred_region
        %s164 = ssub.s32 %s14, 1
        // Predicated region
        $region13: #{poswise_ffn.1} parent=11 // pred_check
          %p165 = pneg %p61
        $region14: #{poswise_ffn.1} parent=11 // pred_check_branch
          %167 = sbr.rel (%p165) target = $region16
        $region15: #{poswise_ffn.1} parent=11 // pred_region
          _
        $region16: #{poswise_ffn.1} parent=11 // pred_fallthru
          _
        // Predicated region
        $region17: #{poswise_ffn.1} parent=11 // pred_check
          %p168 = pneg %p82
        $region18: #{poswise_ffn.1} parent=11 // pred_check_branch
          %170 = sbr.rel (%p168) target = $region20
        $region19: #{poswise_ffn.1} parent=11 // pred_region
          _
        $region20: #{poswise_ffn.1} parent=11 // pred_fallthru
          _
        // Predicated region
        $region21: #{poswise_ffn.1} parent=11 // pred_check
          %p171 = pneg %p103
        $region22: #{poswise_ffn.1} parent=11 // pred_check_branch
          %173 = sbr.rel (%p171) target = $region24
        $region23: #{poswise_ffn.1} parent=11 // pred_region
          _
        $region24: #{poswise_ffn.1} parent=11 // pred_fallthru
          _
        // Predicated region
        $region25: #{poswise_ffn.1} parent=11 // pred_check
          %p174 = pneg %p124
        $region26: #{poswise_ffn.1} parent=11 // pred_check_branch
          %176 = sbr.rel (%p174) target = $region28
        $region27: #{poswise_ffn.1} parent=11 // pred_region
          _
        $region28: #{poswise_ffn.1} parent=11 // pred_fallthru
          _
      $region12: #{poswise_ffn.1} parent=5 // pred_fallthru
        _
      %p177 = scmp.lt.s32.totalorder %s14, 2
      // Predicated region
      $region29: #{poswise_ffn.1} parent=5 // pred_check
        %p178 = pneg %p177
      $region30: #{poswise_ffn.1} parent=5 // pred_check_branch
        %180 = sbr.rel (%p178) target = $region32
      $region31: #{poswise_ffn.1} parent=5 // pred_region
        // Predicated region
        $region33: #{poswise_ffn.1} parent=31 // pred_check
          %p181 = pneg %p34
        $region34: #{poswise_ffn.1} parent=31 // pred_check_branch
          %183 = sbr.rel (%p181) target = $region36
        $region35: #{poswise_ffn.1} parent=31 // pred_region
          %p184 = scmp.lt.s32.totalorder %s14, 1
          %s185 = scalar_select %p184, %s14, 1
          %s186 = smul.addr %s185, 8
          %s187 = scalar_lea.vmem %s0, %s186
        $region36: #{poswise_ffn.1} parent=31 // pred_fallthru
          _
      $region32: #{poswise_ffn.1} parent=5 // pred_fallthru
        _
      %p188 = scmp.le.s32.totalorder 1, %s14
      %p189 = scmp.lt.s32.totalorder %s14, 3
      %p190 = pnand %p188, %p189
      %p191 = pneg %p190
      // Predicated region
      $region37: #{poswise_ffn.1} parent=5 // pred_check
        _
      $region38: #{poswise_ffn.1} parent=5 // pred_check_branch
        %193 = sbr.rel (%p190) target = $region40
      $region39: #{poswise_ffn.1} parent=5 // pred_region
        %s194 = ssub.s32 %s14, 1
        %p195 = scmp.lt.s32.totalorder %s19, 1
        %s196 = scalar_select %p195, %s19, 1
        %s197 = smul.addr %s196, 8
        %s198 = scalar_lea.vmem %s0, %s197
        %p199 = pneg %p40
        %p200 = pneg %p37
        %p201 = pneg %p61
        %p202 = pneg %p58
        %p203 = pneg %p82
        %p204 = pneg %p79
        %p205 = pneg %p103
        %p206 = pneg %p100
        %p207 = pneg %p124
        %p208 = pneg %p121
        %p209 = pneg %p150
        %p210 = pneg %p147
        %s211 = sand.u32 %s137, 1
        %s212 = scalar_lea.sflag [#allocation3], %s211
        %s213 = sand.u32 %s137, 1
        %s214 = smul.addr %s213, 8
        %s215 = scalar_lea.vmem [#allocation2], %s214
        %p216 = scmp.lt.s32.totalorder %s19, 1
        %s217 = scalar_select %p216, %s19, 1
        %s218 = smul.addr %s217, 8
        %s219 = scalar_lea.vmem %s0, %s218
        %v220 = vld [vmem:[%s219] sm:$0xff]
        %v221 = vpack.c.bf16 %v220, %v220
        %v222 = vld [vmem:[%s1] sm:$0xff]
        %v223 = vld [vmem:[%s1 + $0x8] sm:$0xff]
        %v224 = vld [vmem:[%s1 + $0x10] sm:$0xff]
        %v225 = vld [vmem:[%s1 + $0x18] sm:$0xff]
        %v226 = vld [vmem:[%s1 + $0x20] sm:$0xff]
        %v227 = vld [vmem:[%s1 + $0x28] sm:$0xff]
        %v228 = vld [vmem:[%s1 + $0x30] sm:$0xff]
        %v229 = vld [vmem:[%s1 + $0x38] sm:$0xff]
        %v230 = vld [vmem:[%s1 + $0x40] sm:$0xff]
        %v231 = vld [vmem:[%s1 + $0x48] sm:$0xff]
        %v232 = vld [vmem:[%s1 + $0x50] sm:$0xff]
        %v233 = vld [vmem:[%s1 + $0x58] sm:$0xff]
        %v234 = vld [vmem:[%s1 + $0x60] sm:$0xff]
        %v235 = vld [vmem:[%s1 + $0x68] sm:$0xff]
        %v236 = vld [vmem:[%s1 + $0x70] sm:$0xff]
        %v237 = vld [vmem:[%s1 + $0x78] sm:$0xff]
        %v238 = vld [vmem:[%s2] sm:$0x3]
        %v240 = vperm.slane %v238, 0
        %v241 = vperm.slane %v238, 1
        %v260 = vunpack.c.l.b16 %v222
        %v261 = vunpack.c.h.b16 %v222
        %v262 = vunpack.c.l.b16 %v223
        %v263 = vunpack.c.h.b16 %v223
        %v264 = vunpack.c.l.b16 %v224
        %v265 = vunpack.c.h.b16 %v224
        %v266 = vunpack.c.l.b16 %v225
        %v267 = vunpack.c.h.b16 %v225
        %v268 = vunpack.c.l.b16 %v226
        %v269 = vunpack.c.h.b16 %v226
        %v270 = vunpack.c.l.b16 %v227
        %v271 = vunpack.c.h.b16 %v227
        %v272 = vunpack.c.l.b16 %v228
        %v273 = vunpack.c.h.b16 %v228
        %v274 = vunpack.c.l.b16 %v229
        %v275 = vunpack.c.h.b16 %v229
        %v276 = vunpack.c.l.b16 %v230
        %v277 = vunpack.c.h.b16 %v230
        %v278 = vunpack.c.l.b16 %v231
        %v279 = vunpack.c.h.b16 %v231
        %v280 = vunpack.c.l.b16 %v232
        %v281 = vunpack.c.h.b16 %v232
        %v282 = vunpack.c.l.b16 %v233
        %v283 = vunpack.c.h.b16 %v233
        %v284 = vunpack.c.l.b16 %v234
        %v285 = vunpack.c.h.b16 %v234
        %v286 = vunpack.c.l.b16 %v235
        %v287 = vunpack.c.h.b16 %v235
        %v288 = vunpack.c.l.b16 %v236
        %v289 = vunpack.c.h.b16 %v236
        %v290 = vunpack.c.l.b16 %v237
        %v291 = vunpack.c.h.b16 %v237
        %v292 = vpack.c.b16 %v262, %v260
        %v293 = vpack.c.b16 %v263, %v261
        %v294 = vpack.c.b16 %v266, %v264
        %v295 = vpack.c.b16 %v267, %v265
        %v296 = vpack.c.b16 %v270, %v268
        %v297 = vpack.c.b16 %v271, %v269
        %v298 = vpack.c.b16 %v274, %v272
        %v299 = vpack.c.b16 %v275, %v273
        %v300 = vpack.c.b16 %v278, %v276
        %v301 = vpack.c.b16 %v279, %v277
        %v302 = vpack.c.b16 %v282, %v280
        %v303 = vpack.c.b16 %v283, %v281
        %v304 = vpack.c.b16 %v286, %v284
        %v305 = vpack.c.b16 %v287, %v285
        %v306 = vpack.c.b16 %v290, %v288
        %v307 = vpack.c.b16 %v291, %v289
        %324 = vmatpush.bf16.msra.mxu0 %v306
        %325 = vmatpush.bf16.msra.mxu0 %v304
        %326 = vmatpush.bf16.msra.mxu0 %v302
        %327 = vmatpush.bf16.msra.mxu0 %v300
        %328 = vmatpush.bf16.msra.mxu0 %v298
        %329 = vmatpush.bf16.msra.mxu0 %v296
        %330 = vmatpush.bf16.msra.mxu0 %v294
        %331 = vmatpush.bf16.msra.mxu0 %v292
        %332 = vmatmul.bf16.gmra.mxu0 %v221
        %v333 = vpop.f32.mrf.mxu0
        %v334 = vadd.f32 %v240, %v333
        %v335 = vpop.f32.mrf.mxu0
        %336 = vdwg.mxu0
        %337 = vmatpush.bf16.msra.mxu0 %v307
        %338 = vmatpush.bf16.msra.mxu0 %v305
        %339 = vmatpush.bf16.msra.mxu0 %v303
        %340 = vmatpush.bf16.msra.mxu0 %v301
        %341 = vmatpush.bf16.msra.mxu0 %v299
        %342 = vmatpush.bf16.msra.mxu0 %v297
        %343 = vmatpush.bf16.msra.mxu0 %v295
        %344 = vmatpush.bf16.msra.mxu0 %v293
        %345 = vmatmul.bf16.gmra.mxu0 %v221
        %v346 = vpop.f32.mrf.mxu0
        %v347 = vadd.f32 %v241, %v346
        %v348 = vpop.f32.mrf.mxu0
        %349 = vdwg.mxu0
        %v350 = vmax.f32 %v334, 0.0
        %v351 = vmax.f32 %v347, 0.0
        %v352 = vpack.c.bf16 %v350, %v350
        %v353 = vpack.c.bf16 %v351, %v351
        %v354 = vld [vmem:[%s3] sm:$0xf]
        %v355 = vld [vmem:[%s3 + $0x4] sm:$0xf]
        %v356 = vld [vmem:[%s3 + $0x8] sm:$0xf]
        %v357 = vld [vmem:[%s3 + $0xc] sm:$0xf]
        %v358 = vld [vmem:[%s3 + $0x10] sm:$0xf]
        %v359 = vld [vmem:[%s3 + $0x14] sm:$0xf]
        %v360 = vld [vmem:[%s3 + $0x18] sm:$0xf]
        %v361 = vld [vmem:[%s3 + $0x1c] sm:$0xf]
        %v362 = vld [vmem:[%s3 + $0x20] sm:$0xf]
        %v363 = vld [vmem:[%s3 + $0x24] sm:$0xf]
        %v364 = vld [vmem:[%s3 + $0x28] sm:$0xf]
        %v365 = vld [vmem:[%s3 + $0x2c] sm:$0xf]
        %v366 = vld [vmem:[%s3 + $0x30] sm:$0xf]
        %v367 = vld [vmem:[%s3 + $0x34] sm:$0xf]
        %v368 = vld [vmem:[%s3 + $0x38] sm:$0xf]
        %v369 = vld [vmem:[%s3 + $0x3c] sm:$0xf]
        %v370 = vld [vmem:[%s3 + $0x40] sm:$0xf]
        %v371 = vld [vmem:[%s3 + $0x44] sm:$0xf]
        %v372 = vld [vmem:[%s3 + $0x48] sm:$0xf]
        %v373 = vld [vmem:[%s3 + $0x4c] sm:$0xf]
        %v374 = vld [vmem:[%s3 + $0x50] sm:$0xf]
        %v375 = vld [vmem:[%s3 + $0x54] sm:$0xf]
        %v376 = vld [vmem:[%s3 + $0x58] sm:$0xf]
        %v377 = vld [vmem:[%s3 + $0x5c] sm:$0xf]
        %v378 = vld [vmem:[%s3 + $0x60] sm:$0xf]
        %v379 = vld [vmem:[%s3 + $0x64] sm:$0xf]
        %v380 = vld [vmem:[%s3 + $0x68] sm:$0xf]
        %v381 = vld [vmem:[%s3 + $0x6c] sm:$0xf]
        %v382 = vld [vmem:[%s3 + $0x70] sm:$0xf]
        %v383 = vld [vmem:[%s3 + $0x74] sm:$0xf]
        %v384 = vld [vmem:[%s3 + $0x78] sm:$0xf]
        %v385 = vld [vmem:[%s3 + $0x7c] sm:$0xf]
        %v386 = vld [vmem:[%s4] sm:$0x7]
        %v387 = vperm.slane %v386, 0
        %v420 = vunpack.c.l.b16 %v354
        %v421 = vunpack.c.l.b16 %v355
        %v422 = vunpack.c.l.b16 %v356
        %v423 = vunpack.c.l.b16 %v357
        %v424 = vunpack.c.l.b16 %v358
        %v425 = vunpack.c.l.b16 %v359
        %v426 = vunpack.c.l.b16 %v360
        %v427 = vunpack.c.l.b16 %v361
        %v428 = vunpack.c.l.b16 %v362
        %v429 = vunpack.c.l.b16 %v363
        %v430 = vunpack.c.l.b16 %v364
        %v431 = vunpack.c.l.b16 %v365
        %v432 = vunpack.c.l.b16 %v366
        %v433 = vunpack.c.l.b16 %v367
        %v434 = vunpack.c.l.b16 %v368
        %v435 = vunpack.c.l.b16 %v369
        %v436 = vunpack.c.l.b16 %v370
        %v437 = vunpack.c.l.b16 %v371
        %v438 = vunpack.c.l.b16 %v372
        %v439 = vunpack.c.l.b16 %v373
        %v440 = vunpack.c.l.b16 %v374
        %v441 = vunpack.c.l.b16 %v375
        %v442 = vunpack.c.l.b16 %v376
        %v443 = vunpack.c.l.b16 %v377
        %v444 = vunpack.c.l.b16 %v378
        %v445 = vunpack.c.l.b16 %v379
        %v446 = vunpack.c.l.b16 %v380
        %v447 = vunpack.c.l.b16 %v381
        %v448 = vunpack.c.l.b16 %v382
        %v449 = vunpack.c.l.b16 %v383
        %v450 = vunpack.c.l.b16 %v384
        %v451 = vunpack.c.l.b16 %v385
        %v452 = vpack.c.b16 %v421, %v420
        %v453 = vpack.c.b16 %v423, %v422
        %v454 = vpack.c.b16 %v425, %v424
        %v455 = vpack.c.b16 %v427, %v426
        %v456 = vpack.c.b16 %v429, %v428
        %v457 = vpack.c.b16 %v431, %v430
        %v458 = vpack.c.b16 %v433, %v432
        %v459 = vpack.c.b16 %v435, %v434
        %v460 = vpack.c.b16 %v437, %v436
        %v461 = vpack.c.b16 %v439, %v438
        %v462 = vpack.c.b16 %v441, %v440
        %v463 = vpack.c.b16 %v443, %v442
        %v464 = vpack.c.b16 %v445, %v444
        %v465 = vpack.c.b16 %v447, %v446
        %v466 = vpack.c.b16 %v449, %v448
        %v467 = vpack.c.b16 %v451, %v450
        %484 = vmatpush.bf16.msra.mxu0 %v459
        %485 = vmatpush.bf16.msra.mxu0 %v458
        %486 = vmatpush.bf16.msra.mxu0 %v457
        %487 = vmatpush.bf16.msra.mxu0 %v456
        %488 = vmatpush.bf16.msra.mxu0 %v455
        %489 = vmatpush.bf16.msra.mxu0 %v454
        %490 = vmatpush.bf16.msra.mxu0 %v453
        %491 = vmatpush.bf16.msra.mxu0 %v452
        %492 = vmatmul.bf16.gmra.mxu0 %v352
        %v493 = vpop.f32.mrf.mxu0
        %v494 = vadd.f32 %v387, %v493
        %v495 = vpop.f32.mrf.mxu0
        %496 = vdwg.mxu0
        %497 = vmatpush.bf16.msra.mxu0 %v467
        %498 = vmatpush.bf16.msra.mxu0 %v466
        %499 = vmatpush.bf16.msra.mxu0 %v465
        %500 = vmatpush.bf16.msra.mxu0 %v464
        %501 = vmatpush.bf16.msra.mxu0 %v463
        %502 = vmatpush.bf16.msra.mxu0 %v462
        %503 = vmatpush.bf16.msra.mxu0 %v461
        %504 = vmatpush.bf16.msra.mxu0 %v460
        %505 = vmatmul.bf16.gmra.mxu0 %v353
        %v506 = vpop.f32.mrf.mxu0
        %v507 = vadd.f32 %v494, %v506
        %v508 = vpop.f32.mrf.mxu0
        %509 = vdwg.mxu0
        %v510 = vadd.f32 %v507, %v220
        %511 = vadd.xlane.f32.xlu0 %v510
        %v512 = vpop.xlane.xlu0 %511
        %v513 = vrcp.pop 128.0
        %v514 = vmul.f32 128.0, %v513
        %v515 = vsub.f32 1.0, %v514
        %v516 = vmul.f32 %v513, %v515
        %v517 = vadd.f32 %v513, %v516
        %vm518 = vweird.f32 %v513
        %v519 = vsel %vm518, %v513, %v517
        %v520 = vmul.f32 %v512, %v519
        %v521 = vmul.f32 %v510, %v510
        %522 = vadd.xlane.f32.xlu0 %v521
        %v523 = vpop.xlane.xlu0 %522
        %v524 = vmul.f32 %v523, %v519
        %v525 = vmul.f32 %v520, %v520
        %v526 = vsub.f32 %v524, %v525
        %v527 = vmax.f32 %v526, 0.0
        %v528 = vsub.f32 %v510, %v520
        %v529 = vadd.f32 %v527, 1e-05
        %v530 = vrsqrt.pop %v529
        %v531 = vmul.f32 %v530, %v529
        %v532 = vmul.f32 %v531, %v530
        %v533 = vmul.f32 0.5, %v532
        %v534 = vsub.f32 1.5, %v533
        %v535 = vmul.f32 %v530, %v534
        %vm536 = vweird.f32 %v529
        %vm537 = vweird.f32 %v530
        %vm538 = vmor %vm536, %vm537
        %v539 = vsel %vm538, %v530, %v535
        %v540 = vmul.f32 %v528, %v539
        %v541 = vperm.slane %v386, 1
        %v542 = vmul.f32 %v540, %v541
        %v543 = vperm.slane %v386, 2
        %v544 = vadd.f32 %v542, %v543
        %545 = vst [vmem:[%s215] sm:$0xff] %v544
        %s546 = sand.u32 %s137, 1
        %s547 = scalar_lea.sflag [#allocation3], %s546
        %s548 = sand.u32 %s137, 1
        %s549 = smul.addr %s548, 8
        %s550 = scalar_lea.vmem [#allocation2], %s549
        // Predicated region
        $region41: #{poswise_ffn.1} parent=39 // pred_check
          %p551 = pneg %p147
        $region42: #{poswise_ffn.1} parent=39 // pred_check_branch
          %553 = sbr.rel (%p551) target = $region44
        $region43: #{poswise_ffn.1} parent=39 // pred_region
          %555 = vsyncadd %s547, 0
          %s556 = smul.addr %s19, 8
          %s557 = scalar_lea.hbm %s5, %s556
          %s559 = sshll.u32 %s550, 4
          %s560 = int_to_ptr.vmem [resolvable:$true] %s559
          %s561 = sshll.u32 %s557, 4
          %s562 = int_to_ptr.hbm [resolvable:$true] %s561
          %564 = dma.vmem_to_hbm [thread:$0]  %s560, 128, %s562, %s547
        $region44: #{poswise_ffn.1} parent=39 // pred_fallthru
          _
      $region40: #{poswise_ffn.1} parent=5 // pred_fallthru
        _
      %p565 = scmp.le.s32.totalorder 2, %s14
      // Predicated region
      $region45: #{poswise_ffn.1} parent=5 // pred_check
        %p566 = pneg %p565
      $region46: #{poswise_ffn.1} parent=5 // pred_check_branch
        %568 = sbr.rel (%p566) target = $region48
      $region47: #{poswise_ffn.1} parent=5 // pred_region
        %s569 = ssub.s32 %s14, 2
        // Predicated region
        $region49: #{poswise_ffn.1} parent=47 // pred_check
          %p570 = pneg %p153
        $region50: #{poswise_ffn.1} parent=47 // pred_check_branch
          %572 = sbr.rel (%p570) target = $region52
        $region51: #{poswise_ffn.1} parent=47 // pred_region
          %s573 = sand.u32 %s138, 1
          %s574 = scalar_lea.sflag [#allocation3], %s573
          %s575 = sand.u32 %s138, 1
          %s576 = smul.addr %s575, 8
          %s577 = scalar_lea.vmem [#allocation2], %s576
          %579 = dma.done %s574, 128
        $region52: #{poswise_ffn.1} parent=47 // pred_fallthru
          _
      $region48: #{poswise_ffn.1} parent=5 // pred_fallthru
        _
    $region6: #{poswise_ffn.1} parent=1 // loop_footer
      %s18 = sadd.s32 1, %s14
    $region7: #{poswise_ffn.1} parent=1 // loop_footer_branch
      %13 = sbr.rel target = $region3
    $region8: #{poswise_ffn.1} parent=1 // loop_exit
      _
    %580 = vsyncpa [#allocation3], 1
    %s581 = scalar_lea.sflag [#allocation3], 1
    %582 = vsyncpa %s581, 1

</llo_original>
